<compile_context>
chip_gen: v6e
topology: v6e:2x2x1
jax: 0.10.0
libtpu: 0.0.40
codegen_flags: <defaults>
</compile_context>

<pallas_src>
import functools

import jax
import jax.numpy as jnp
from jax.experimental import pallas as pl
from jax.experimental.pallas import tpu as pltpu

IN_DIM = 784
H_DIM = 100
OUT_DIM = 10

# Lane-dense padded dims (multiples of 128).  Keep at 128 -- do not grow.
H_PAD = 128
OUT_PAD = 128

# Max rows per grid step (hardware M tile), multiple of 8.
MAX_BLOCK_M = 1024


def _round_up(n, m):
    return ((n + m - 1) // m) * m


def _choose_block_m(batch):
    """Rows per grid step: as large as possible, but at least 2 blocks when
    B > 16 so both v7x TensorCores get work via the 'parallel' grid axis."""
    if batch <= 16:
        return _round_up(max(batch, 1), 8)
    half = -(-batch // 2)  # cdiv(batch, 2)
    return min(MAX_BLOCK_M, _round_up(half, 8))


def _mlp_kernel(x_ref, w1_ref, b1_ref, w2_ref, b2_ref, w3_ref, b3_ref, o_ref):
    """One M-tile of rows through all three shards (Linear + ReLU, x3)."""
    cdt = w2_ref.dtype           # MXU operand dtype (f32 or bf16)
    # x streams from HBM in its native dtype; cast in-kernel (no wrapper copy).
    x = x_ref[...].astype(cdt)
    # All dots accumulate in f32 on the MXU; bias-add + ReLU stay in f32
    # (required on v5e, whose VPU has no bf16).
    h1 = jnp.maximum(
        jnp.dot(x, w1_ref[...], preferred_element_type=jnp.float32) + b1_ref[...],
        0.0,
    )
    h2 = jnp.maximum(
        jnp.dot(h1.astype(cdt), w2_ref[...], preferred_element_type=jnp.float32)
        + b2_ref[...],
        0.0,
    )
    y = jnp.maximum(
        jnp.dot(h2.astype(cdt), w3_ref[...], preferred_element_type=jnp.float32)
        + b3_ref[...],
        0.0,
    )
    o_ref[...] = y.astype(o_ref.dtype)


@functools.partial(jax.jit, static_argnames=("compute_dtype", "microbatch_size"))
def dist_mnist_forward(
    x, w1, b1, w2, b2, w3, b3, *, compute_dtype=jnp.bfloat16, microbatch_size=None
):
    """Pallas implementation of DistMNIST.forward.

    x: (B, 784) in its native dtype (typically f32).  Weights are (in, out);
    biases are (1, out).

    `compute_dtype` selects the MXU operand dtype.  bf16 is recommended on all
    TPU generations (accumulation is always f32); f32 is the exact path.

    `microbatch_size` is accepted for API parity with DistMNIST but is an
    execution-strategy detail with no effect on the result; the kernel tiles
    rows for the hardware (large M blocks) instead.
    """
    del microbatch_size  # pipeline microbatching does not change the math
    B = x.shape[0]
    if B == 0:
        return jnp.zeros((0, OUT_DIM), x.dtype)

    cdt = jnp.dtype(compute_dtype)
    out_dtype = jnp.float32 if cdt == jnp.dtype(jnp.float32) else cdt

    block_m = _choose_block_m(B)
    n_blocks = pl.cdiv(B, block_m)

    # Weights/biases are tiny and resident across all grid steps: pad lane
    # dims (H: 100->128, OUT: 10->128) and pre-cast once in the wrapper.
    # Exact: padded hidden columns stay 0 through ReLU, padded W2/W3 rows are
    # 0, padded output columns are sliced off below.
    w1p = jnp.pad(w1, ((0, 0), (0, H_PAD - H_DIM))).astype(cdt)
    b1p = jnp.pad(b1, ((0, 0), (0, H_PAD - H_DIM))).astype(jnp.float32)
    b2p = jnp.pad(b2, ((0, 0), (0, H_PAD - H_DIM))).astype(jnp.float32)
    w2p = jnp.pad(w2, ((0, H_PAD - H_DIM), (0, H_PAD - H_DIM))).astype(cdt)
    w3p = jnp.pad(w3, ((0, H_PAD - H_DIM), (0, OUT_PAD - OUT_DIM))).astype(cdt)
    b3p = jnp.pad(b3, ((0, 0), (0, OUT_PAD - OUT_DIM))).astype(jnp.float32)

    cost = pl.CostEstimate(
        flops=2 * B * (IN_DIM * H_PAD + H_PAD * H_PAD + H_PAD * OUT_PAD),
        transcendentals=0,
        bytes_accessed=(
            B * IN_DIM * x.dtype.itemsize                                   # x (native dtype)
            + (IN_DIM * H_PAD + H_PAD * H_PAD + H_PAD * OUT_PAD) * cdt.itemsize  # weights
            + (2 * H_PAD + OUT_PAD) * 4                                     # biases (f32)
            + B * OUT_PAD * jnp.dtype(out_dtype).itemsize                   # output
        ),
    )

    full = lambda i: (0, 0)  # weights/biases: same (whole) block every step

    out = pl.pallas_call(
        _mlp_kernel,
        out_shape=jax.ShapeDtypeStruct((B, OUT_PAD), out_dtype),
        grid_spec=pl.GridSpec(
            grid=(n_blocks,),
            in_specs=[
                pl.BlockSpec((block_m, IN_DIM), lambda i: (i, 0)),
                pl.BlockSpec((IN_DIM, H_PAD), full),
                pl.BlockSpec((1, H_PAD), full),
                pl.BlockSpec((H_PAD, H_PAD), full),
                pl.BlockSpec((1, H_PAD), full),
                pl.BlockSpec((H_PAD, OUT_PAD), full),
                pl.BlockSpec((1, OUT_PAD), full),
            ],
            out_specs=pl.BlockSpec((block_m, OUT_PAD), lambda i: (i, 0)),
        ),
        compiler_params=pltpu.CompilerParams(
            dimension_semantics=("parallel",),
        ),
        cost_estimate=cost,
    )(x, w1p, b1p, w2p, b2p, w3p, b3p)

    # Slice off the lane padding; cast back to the caller's dtype (tiny op).
    return out[:, :OUT_DIM].astype(x.dtype)


def _init_linear(key, fan_in, fan_out):
    """Deterministic init mimicking torch.nn.Linear default (uniform +-1/sqrt(fan_in))."""
    kw, kb = jax.random.split(key)
    bound = 1.0 / (fan_in**0.5)
    # Store weight as (in, out) so the kernel uses x @ W directly.
    w = jax.random.uniform(kw, (fan_in, fan_out), jnp.float32, -bound, bound)
    b = jax.random.uniform(kb, (1, fan_out), jnp.float32, -bound, bound)
    return w, b


def _reference_forward(x, w1, b1, w2, b2, w3, b3):
    h1 = jnp.maximum(x @ w1 + b1, 0.0)
    h2 = jnp.maximum(h1 @ w2 + b2, 0.0)
    return jnp.maximum(h2 @ w3 + b3, 0.0)


if __name__ == "__main__":
    key = jax.random.PRNGKey(0)
    kx, k1, k2, k3 = jax.random.split(key, 4)

    batch = 16
    microbatch_size = 8  # DistMNIST(..., microbatch_size=8) — API parity only

    x = jax.random.normal(kx, (batch, IN_DIM), jnp.float32)
    w1, b1 = _init_linear(k1, IN_DIM, H_DIM)
    w2, b2 = _init_linear(k2, H_DIM, H_DIM)
    w3, b3 = _init_linear(k3, H_DIM, OUT_DIM)

    ref = _reference_forward(x, w1, b1, w2, b2, w3, b3)

    # f32 path (exact vs reference).
    out_f32 = jax.block_until_ready(
        dist_mnist_forward(
            x, w1, b1, w2, b2, w3, b3,
            compute_dtype=jnp.float32, microbatch_size=microbatch_size,
        )
    )
    assert out_f32.shape == (batch, OUT_DIM)
    assert jnp.allclose(out_f32, ref, atol=1e-4, rtol=1e-4), "f32 mismatch vs reference"

    # bf16 MXU path (recommended default on v5e/v6e/v7x): bf16 operands,
    # f32 accumulation, bf16 output writeback.
    out_bf16 = jax.block_until_ready(
        dist_mnist_forward(
            x, w1, b1, w2, b2, w3, b3,
            compute_dtype=jnp.bfloat16, microbatch_size=microbatch_size,
        )
    )
    assert out_bf16.shape == (batch, OUT_DIM)
    assert jnp.allclose(out_bf16, ref, atol=0.1, rtol=0.1), "bf16 mismatch vs reference"

    # Ragged batch (not a multiple of block_m): exercises the Pallas-clipped
    # last block (no wrapper-side row padding) and the >=2-block split.
    batch_r = 20
    xr = jax.random.normal(kx, (batch_r, IN_DIM), jnp.float32)
    out_r = jax.block_until_ready(
        dist_mnist_forward(
            xr, w1, b1, w2, b2, w3, b3,
            compute_dtype=jnp.float32, microbatch_size=microbatch_size,
        )
    )
    ref_r = _reference_forward(xr, w1, b1, w2, b2, w3, b3)
    assert out_r.shape == (batch_r, OUT_DIM)
    assert jnp.allclose(out_r, ref_r, atol=1e-4, rtol=1e-4), "ragged-batch mismatch"

    # TODO(synk): RPC/RemoteModule pipeline scheduling (futures, per-shard
    # workers) is an execution strategy with no Pallas equivalent; the math is
    # fully captured by the fused 3-layer kernel above.
    print("KERNEL_OK")
</pallas_src>

<mosaic_0001>
module attributes {stable_mosaic.version = 11 : i64} {
  func.func @_mlp_kernel(%arg0: i32, %arg1: memref<16x784xf32, #tpu.memory_space<vmem>>, %arg2: memref<784x128xf32, #tpu.memory_space<vmem>>, %arg3: memref<1x128xf32, #tpu.memory_space<vmem>>, %arg4: memref<128x128xf32, #tpu.memory_space<vmem>>, %arg5: memref<1x128xf32, #tpu.memory_space<vmem>>, %arg6: memref<128x128xf32, #tpu.memory_space<vmem>>, %arg7: memref<1x128xf32, #tpu.memory_space<vmem>>, %arg8: memref<16x128xf32, #tpu.memory_space<vmem>>) attributes {dimension_semantics = [#tpu.dimension_semantics<parallel>], iteration_bounds = array<i64: 1>, scalar_prefetch = 0 : i64, scratch_operands = 0 : i64, tpu.core_type = #tpu.core_type<tc>, window_params = [{transform_indices = @transform_0, window_bounds = array<i64: 16, 784>}, {pipeline_mode = #tpu.pipeline_mode<synchronous>, transform_indices = @transform_1, window_bounds = array<i64: 784, 128>}, {pipeline_mode = #tpu.pipeline_mode<synchronous>, transform_indices = @transform_2, window_bounds = array<i64: 1, 128>}, {pipeline_mode = #tpu.pipeline_mode<synchronous>, transform_indices = @transform_3, window_bounds = array<i64: 128, 128>}, {pipeline_mode = #tpu.pipeline_mode<synchronous>, transform_indices = @transform_4, window_bounds = array<i64: 1, 128>}, {pipeline_mode = #tpu.pipeline_mode<synchronous>, transform_indices = @transform_5, window_bounds = array<i64: 128, 128>}, {pipeline_mode = #tpu.pipeline_mode<synchronous>, transform_indices = @transform_6, window_bounds = array<i64: 1, 128>}, {transform_indices = @transform_7, window_bounds = array<i64: 16, 128>}]} {
    %c0 = arith.constant 0 : index
    %c0_0 = arith.constant 0 : index
    %0 = vector.load %arg1[%c0, %c0_0] : memref<16x784xf32, #tpu.memory_space<vmem>>, vector<16x784xf32>
    %c0_1 = arith.constant 0 : index
    %c0_2 = arith.constant 0 : index
    %1 = vector.load %arg2[%c0_1, %c0_2] : memref<784x128xf32, #tpu.memory_space<vmem>>, vector<784x128xf32>
    %cst = arith.constant dense<0.000000e+00> : vector<16x128xf32>
    %2 = tpu.matmul %0, %1, %cst {dimension_numbers = #tpu.dot_dimension_numbers<[1], [0], [0], [1], [0, 0, 1, 1], [], []>} : vector<16x784xf32>, vector<784x128xf32>, vector<16x128xf32> -> vector<16x128xf32>
    %c0_3 = arith.constant 0 : index
    %c0_4 = arith.constant 0 : index
    %3 = vector.load %arg3[%c0_3, %c0_4] : memref<1x128xf32, #tpu.memory_space<vmem>>, vector<1x128xf32>
    %4 = vector.broadcast %3 : vector<1x128xf32> to vector<16x128xf32>
    %5 = arith.addf %2, %4 : vector<16x128xf32>
    %cst_5 = arith.constant 0.000000e+00 : f32
    %6 = vector.broadcast %cst_5 : f32 to vector<16x128xf32>
    %7 = arith.maximumf %5, %6 : vector<16x128xf32>
    %c0_6 = arith.constant 0 : index
    %c0_7 = arith.constant 0 : index
    %8 = vector.load %arg4[%c0_6, %c0_7] : memref<128x128xf32, #tpu.memory_space<vmem>>, vector<128x128xf32>
    %cst_8 = arith.constant dense<0.000000e+00> : vector<16x128xf32>
    %9 = tpu.matmul %7, %8, %cst_8 {dimension_numbers = #tpu.dot_dimension_numbers<[1], [0], [0], [1], [0, 0, 1, 1], [], []>} : vector<16x128xf32>, vector<128x128xf32>, vector<16x128xf32> -> vector<16x128xf32>
    %c0_9 = arith.constant 0 : index
    %c0_10 = arith.constant 0 : index
    %10 = vector.load %arg5[%c0_9, %c0_10] : memref<1x128xf32, #tpu.memory_space<vmem>>, vector<1x128xf32>
    %11 = vector.broadcast %10 : vector<1x128xf32> to vector<16x128xf32>
    %12 = arith.addf %9, %11 : vector<16x128xf32>
    %cst_11 = arith.constant 0.000000e+00 : f32
    %13 = vector.broadcast %cst_11 : f32 to vector<16x128xf32>
    %14 = arith.maximumf %12, %13 : vector<16x128xf32>
    %c0_12 = arith.constant 0 : index
    %c0_13 = arith.constant 0 : index
    %15 = vector.load %arg6[%c0_12, %c0_13] : memref<128x128xf32, #tpu.memory_space<vmem>>, vector<128x128xf32>
    %cst_14 = arith.constant dense<0.000000e+00> : vector<16x128xf32>
    %16 = tpu.matmul %14, %15, %cst_14 {dimension_numbers = #tpu.dot_dimension_numbers<[1], [0], [0], [1], [0, 0, 1, 1], [], []>} : vector<16x128xf32>, vector<128x128xf32>, vector<16x128xf32> -> vector<16x128xf32>
    %c0_15 = arith.constant 0 : index
    %c0_16 = arith.constant 0 : index
    %17 = vector.load %arg7[%c0_15, %c0_16] : memref<1x128xf32, #tpu.memory_space<vmem>>, vector<1x128xf32>
    %18 = vector.broadcast %17 : vector<1x128xf32> to vector<16x128xf32>
    %19 = arith.addf %16, %18 : vector<16x128xf32>
    %cst_17 = arith.constant 0.000000e+00 : f32
    %20 = vector.broadcast %cst_17 : f32 to vector<16x128xf32>
    %21 = arith.maximumf %19, %20 : vector<16x128xf32>
    %c0_18 = arith.constant 0 : index
    %c0_19 = arith.constant 0 : index
    %22 = vector.load %arg8[%c0_18, %c0_19] : memref<16x128xf32, #tpu.memory_space<vmem>>, vector<16x128xf32>
    tpu.vector_store %arg8[%c0_18, %c0_19], %21 {strides = array<i32>} : memref<16x128xf32, #tpu.memory_space<vmem>>, vector<16x128xf32>,
    return
  }
  func.func @transform_0(%arg0: i32) -> (i32, i32) {
    %c0_i32 = arith.constant 0 : i32
    %c0_i32_0 = arith.constant 0 : i32
    return %arg0, %c0_i32 : i32, i32
  }
  func.func @transform_1(%arg0: i32) -> (i32, i32) {
    %c0_i32 = arith.constant 0 : i32
    %c0_i32_0 = arith.constant 0 : i32
    %c0_i32_1 = arith.constant 0 : i32
    return %c0_i32, %c0_i32_0 : i32, i32
  }
  func.func @transform_2(%arg0: i32) -> (i32, i32) {
    %c0_i32 = arith.constant 0 : i32
    %c0_i32_0 = arith.constant 0 : i32
    %c0_i32_1 = arith.constant 0 : i32
    return %c0_i32, %c0_i32_0 : i32, i32
  }
  func.func @transform_3(%arg0: i32) -> (i32, i32) {
    %c0_i32 = arith.constant 0 : i32
    %c0_i32_0 = arith.constant 0 : i32
    %c0_i32_1 = arith.constant 0 : i32
    return %c0_i32, %c0_i32_0 : i32, i32
  }
  func.func @transform_4(%arg0: i32) -> (i32, i32) {
    %c0_i32 = arith.constant 0 : i32
    %c0_i32_0 = arith.constant 0 : i32
    %c0_i32_1 = arith.constant 0 : i32
    return %c0_i32, %c0_i32_0 : i32, i32
  }
  func.func @transform_5(%arg0: i32) -> (i32, i32) {
    %c0_i32 = arith.constant 0 : i32
    %c0_i32_0 = arith.constant 0 : i32
    %c0_i32_1 = arith.constant 0 : i32
    return %c0_i32, %c0_i32_0 : i32, i32
  }
  func.func @transform_6(%arg0: i32) -> (i32, i32) {
    %c0_i32 = arith.constant 0 : i32
    %c0_i32_0 = arith.constant 0 : i32
    %c0_i32_1 = arith.constant 0 : i32
    return %c0_i32, %c0_i32_0 : i32, i32
  }
  func.func @transform_7(%arg0: i32) -> (i32, i32) {
    %c0_i32 = arith.constant 0 : i32
    %c0_i32_0 = arith.constant 0 : i32
    return %arg0, %c0_i32 : i32, i32
  }
}

</mosaic_0001>

<llo_original>
// kernel: dist_mnist_forward.1
$region0: #{dist_mnist_forward.1}
  #allocation0 [shape = 'u32[]', space=smem, size = 0x4, offset = 0x4, fixed_abs, tag = 'smem constant byte address 0x4 - core index']
  #allocation1 [shape = 'u32[144,128]{1,0:T(1,128)}', space=vmem, size = 0x12000, scoped, tag = 'internal scratch']
  %s0 = inlined_call_operand.vmem [shape: f32[16,784], index: 0, kind: input, shape index: {}]
  %s1 = inlined_call_operand.vmem [shape: f32[784,128], index: 1, kind: input, shape index: {}]
  %s2 = inlined_call_operand.vmem [shape: f32[1,128], index: 2, kind: input, shape index: {}]
  %s3 = inlined_call_operand.vmem [shape: f32[128,128], index: 3, kind: input, shape index: {}]
  %s4 = inlined_call_operand.vmem [shape: f32[1,128], index: 4, kind: input, shape index: {}]
  %s5 = inlined_call_operand.vmem [shape: f32[128,128], index: 5, kind: input, shape index: {}]
  %s6 = inlined_call_operand.vmem [shape: f32[1,128], index: 6, kind: input, shape index: {}]
  %s7 = inlined_call_operand.hbm [shape: f32[16,128], index: 7, kind: output, shape index: {}]
  %s8 = sld [smem:[#allocation0]]
  $region38: #{dist_mnist_forward.1} parent=0
    _
  %s10 = ssub.s32 1, %s8
  %s11 = scalar_select 0, %s10, %s8
  $region1: #{dist_mnist_forward.1} parent=0
    #allocation2 [shape = 'u8[8192]{0}', space=vmem, size = 0x2000, scoped, tag = 'output window, operand 0, single buffered']
    #allocation3 [shape = 's32[1]{0}', space=sflag, size = 0x4, scoped, tag = 'scoped memory for dist_mnist_forward.1']
    %12 = vsyncpa [#allocation3], 0
    // Predicated region
    $region2: #{dist_mnist_forward.1} parent=1 // pred_check
      _
    $region3: #{dist_mnist_forward.1} parent=1 // pred_check_branch
      %14 = sbr.rel (0) target = $region5
    $region4: #{dist_mnist_forward.1} parent=1 // pred_region
      _
    $region5: #{dist_mnist_forward.1} parent=1 // pred_fallthru
      _
    // Predicated region
    $region6: #{dist_mnist_forward.1} parent=1 // pred_check
      _
    $region7: #{dist_mnist_forward.1} parent=1 // pred_check_branch
      %16 = sbr.rel (0) target = $region9
    $region8: #{dist_mnist_forward.1} parent=1 // pred_region
      _
    $region9: #{dist_mnist_forward.1} parent=1 // pred_fallthru
      _
    // Predicated region
    $region10: #{dist_mnist_forward.1} parent=1 // pred_check
      _
    $region11: #{dist_mnist_forward.1} parent=1 // pred_check_branch
      %18 = sbr.rel (0) target = $region13
    $region12: #{dist_mnist_forward.1} parent=1 // pred_region
      _
    $region13: #{dist_mnist_forward.1} parent=1 // pred_fallthru
      _
    // Predicated region
    $region14: #{dist_mnist_forward.1} parent=1 // pred_check
      _
    $region15: #{dist_mnist_forward.1} parent=1 // pred_check_branch
      %20 = sbr.rel (0) target = $region17
    $region16: #{dist_mnist_forward.1} parent=1 // pred_region
      _
    $region17: #{dist_mnist_forward.1} parent=1 // pred_fallthru
      _
    // Predicated region
    $region18: #{dist_mnist_forward.1} parent=1 // pred_check
      _
    $region19: #{dist_mnist_forward.1} parent=1 // pred_check_branch
      %22 = sbr.rel (0) target = $region21
    $region20: #{dist_mnist_forward.1} parent=1 // pred_region
      _
    $region21: #{dist_mnist_forward.1} parent=1 // pred_fallthru
      _
    // Predicated region
    $region22: #{dist_mnist_forward.1} parent=1 // pred_check
      _
    $region23: #{dist_mnist_forward.1} parent=1 // pred_check_branch
      %24 = sbr.rel (0) target = $region25
    $region24: #{dist_mnist_forward.1} parent=1 // pred_region
      _
    $region25: #{dist_mnist_forward.1} parent=1 // pred_fallthru
      _
    // Predicated region
    $region26: #{dist_mnist_forward.1} parent=1 // pred_check
      _
    $region27: #{dist_mnist_forward.1} parent=1 // pred_check_branch
      %26 = sbr.rel (0) target = $region29
    $region28: #{dist_mnist_forward.1} parent=1 // pred_region
      _
    $region29: #{dist_mnist_forward.1} parent=1 // pred_fallthru
      _
    %v27 = vld [vmem:[%s0] sm:$0xff]
    %v28 = vld [vmem:[%s0 + $0x8] sm:$0xff]
    %v29 = vld [vmem:[%s0 + $0x10] sm:$0xff]
    %v30 = vld [vmem:[%s0 + $0x18] sm:$0xff]
    %v31 = vld [vmem:[%s0 + $0x20] sm:$0xff]
    %v32 = vld [vmem:[%s0 + $0x28] sm:$0xff]
    %v33 = vld [vmem:[%s0 + $0x30] sm:$0xff]
    %v34 = vld [vmem:[%s0 + $0x38] sm:$0xff]
    %v35 = vld [vmem:[%s0 + $0x40] sm:$0xff]
    %v36 = vld [vmem:[%s0 + $0x48] sm:$0xff]
    %v37 = vld [vmem:[%s0 + $0x50] sm:$0xff]
    %v38 = vld [vmem:[%s0 + $0x58] sm:$0xff]
    %v39 = vld [vmem:[%s0 + $0x60] sm:$0xff]
    %v40 = vld [vmem:[%s0 + $0x68] sm:$0xff]
    %v41 = vld [vmem:[%s1] sm:$0xff]
    %v42 = vld [vmem:[%s1 + $0x8] sm:$0xff]
    %v43 = vld [vmem:[%s1 + $0x10] sm:$0xff]
    %v44 = vld [vmem:[%s1 + $0x18] sm:$0xff]
    %v45 = vld [vmem:[%s1 + $0x20] sm:$0xff]
    %v46 = vld [vmem:[%s1 + $0x28] sm:$0xff]
    %v47 = vld [vmem:[%s1 + $0x30] sm:$0xff]
    %v48 = vld [vmem:[%s1 + $0x38] sm:$0xff]
    %v49 = vld [vmem:[%s1 + $0x40] sm:$0xff]
    %v50 = vld [vmem:[%s1 + $0x48] sm:$0xff]
    %v51 = vld [vmem:[%s1 + $0x50] sm:$0xff]
    %v52 = vld [vmem:[%s1 + $0x58] sm:$0xff]
    %v53 = vld [vmem:[%s1 + $0x60] sm:$0xff]
    %v54 = vld [vmem:[%s1 + $0x68] sm:$0xff]
    %v55 = vld [vmem:[%s1 + $0x70] sm:$0xff]
    %v56 = vld [vmem:[%s1 + $0x78] sm:$0xff]
    %v57 = vld [vmem:[%s1 + $0x80] sm:$0xff]
    %v58 = vld [vmem:[%s1 + $0x88] sm:$0xff]
    %v59 = vld [vmem:[%s1 + $0x90] sm:$0xff]
    %v60 = vld [vmem:[%s1 + $0x98] sm:$0xff]
    %v61 = vld [vmem:[%s1 + $0xa0] sm:$0xff]
    %v62 = vld [vmem:[%s1 + $0xa8] sm:$0xff]
    %v63 = vld [vmem:[%s1 + $0xb0] sm:$0xff]
    %v64 = vld [vmem:[%s1 + $0xb8] sm:$0xff]
    %v65 = vld [vmem:[%s1 + $0xc0] sm:$0xff]
    %v66 = vld [vmem:[%s1 + $0xc8] sm:$0xff]
    %v67 = vld [vmem:[%s1 + $0xd0] sm:$0xff]
    %v68 = vld [vmem:[%s1 + $0xd8] sm:$0xff]
    %v69 = vld [vmem:[%s1 + $0xe0] sm:$0xff]
    %v70 = vld [vmem:[%s1 + $0xe8] sm:$0xff]
    %v71 = vld [vmem:[%s1 + $0xf0] sm:$0xff]
    %v72 = vld [vmem:[%s1 + $0xf8] sm:$0xff]
    %v73 = vld [vmem:[%s1 + $0x100] sm:$0xff]
    %v74 = vld [vmem:[%s1 + $0x108] sm:$0xff]
    %v75 = vld [vmem:[%s1 + $0x110] sm:$0xff]
    %v76 = vld [vmem:[%s1 + $0x118] sm:$0xff]
    %v77 = vld [vmem:[%s1 + $0x120] sm:$0xff]
    %v78 = vld [vmem:[%s1 + $0x128] sm:$0xff]
    %v79 = vld [vmem:[%s1 + $0x130] sm:$0xff]
    %v80 = vld [vmem:[%s1 + $0x138] sm:$0xff]
    %v81 = vld [vmem:[%s1 + $0x140] sm:$0xff]
    %v82 = vld [vmem:[%s1 + $0x148] sm:$0xff]
    %v83 = vld [vmem:[%s1 + $0x150] sm:$0xff]
    %v84 = vld [vmem:[%s1 + $0x158] sm:$0xff]
    %v85 = vld [vmem:[%s1 + $0x160] sm:$0xff]
    %v86 = vld [vmem:[%s1 + $0x168] sm:$0xff]
    %v87 = vld [vmem:[%s1 + $0x170] sm:$0xff]
    %v88 = vld [vmem:[%s1 + $0x178] sm:$0xff]
    %v89 = vld [vmem:[%s1 + $0x180] sm:$0xff]
    %v90 = vld [vmem:[%s1 + $0x188] sm:$0xff]
    %v91 = vld [vmem:[%s1 + $0x190] sm:$0xff]
    %v92 = vld [vmem:[%s1 + $0x198] sm:$0xff]
    %v93 = vld [vmem:[%s1 + $0x1a0] sm:$0xff]
    %v94 = vld [vmem:[%s1 + $0x1a8] sm:$0xff]
    %v95 = vld [vmem:[%s1 + $0x1b0] sm:$0xff]
    %v96 = vld [vmem:[%s1 + $0x1b8] sm:$0xff]
    %v97 = vld [vmem:[%s1 + $0x1c0] sm:$0xff]
    %v98 = vld [vmem:[%s1 + $0x1c8] sm:$0xff]
    %v99 = vld [vmem:[%s1 + $0x1d0] sm:$0xff]
    %v100 = vld [vmem:[%s1 + $0x1d8] sm:$0xff]
    %v101 = vld [vmem:[%s1 + $0x1e0] sm:$0xff]
    %v102 = vld [vmem:[%s1 + $0x1e8] sm:$0xff]
    %v103 = vld [vmem:[%s1 + $0x1f0] sm:$0xff]
    %v104 = vld [vmem:[%s1 + $0x1f8] sm:$0xff]
    %v105 = vld [vmem:[%s1 + $0x200] sm:$0xff]
    %v106 = vld [vmem:[%s1 + $0x208] sm:$0xff]
    %v107 = vld [vmem:[%s1 + $0x210] sm:$0xff]
    %v108 = vld [vmem:[%s1 + $0x218] sm:$0xff]
    %v109 = vld [vmem:[%s1 + $0x220] sm:$0xff]
    %v110 = vld [vmem:[%s1 + $0x228] sm:$0xff]
    %v111 = vld [vmem:[%s1 + $0x230] sm:$0xff]
    %v112 = vld [vmem:[%s1 + $0x238] sm:$0xff]
    %v113 = vld [vmem:[%s1 + $0x240] sm:$0xff]
    %v114 = vld [vmem:[%s1 + $0x248] sm:$0xff]
    %v115 = vld [vmem:[%s1 + $0x250] sm:$0xff]
    %v116 = vld [vmem:[%s1 + $0x258] sm:$0xff]
    %v117 = vld [vmem:[%s1 + $0x260] sm:$0xff]
    %v118 = vld [vmem:[%s1 + $0x268] sm:$0xff]
    %v119 = vld [vmem:[%s1 + $0x270] sm:$0xff]
    %v120 = vld [vmem:[%s1 + $0x278] sm:$0xff]
    %v121 = vld [vmem:[%s1 + $0x280] sm:$0xff]
    %v122 = vld [vmem:[%s1 + $0x288] sm:$0xff]
    %v123 = vld [vmem:[%s1 + $0x290] sm:$0xff]
    %v124 = vld [vmem:[%s1 + $0x298] sm:$0xff]
    %v125 = vld [vmem:[%s1 + $0x2a0] sm:$0xff]
    %v126 = vld [vmem:[%s1 + $0x2a8] sm:$0xff]
    %v127 = vld [vmem:[%s1 + $0x2b0] sm:$0xff]
    %v128 = vld [vmem:[%s1 + $0x2b8] sm:$0xff]
    %v129 = vld [vmem:[%s1 + $0x2c0] sm:$0xff]
    %v130 = vld [vmem:[%s1 + $0x2c8] sm:$0xff]
    %v131 = vld [vmem:[%s1 + $0x2d0] sm:$0xff]
    %v132 = vld [vmem:[%s1 + $0x2d8] sm:$0xff]
    %v133 = vld [vmem:[%s1 + $0x2e0] sm:$0xff]
    %v134 = vld [vmem:[%s1 + $0x2e8] sm:$0xff]
    %v135 = vld [vmem:[%s1 + $0x2f0] sm:$0xff]
    %v136 = vld [vmem:[%s1 + $0x2f8] sm:$0xff]
    %v137 = vld [vmem:[%s1 + $0x300] sm:$0xff]
    %v138 = vld [vmem:[%s1 + $0x308] sm:$0xff]
    %v139 = vld [vmem:[%s2] sm:$0x1]
    %v141 = vlaneseq
    %v142 = vshrl.u32 %v141, 7
    %v143 = vsub.s32 0, %v142
    %v144 = vrot.slane %v139, %v143
    %vm146 = vcmask 130048
    %v148 = vsel %vm146, %v33, 0
    %v151 = vsel %vm146, %v40, 0
    %153 = vmatprep.subr.mxu0 0.0
    %154 = vmatpush1.msra.mxu0 %v56
    %155 = vmatprep.subr.mxu0 0.0
    %156 = vmatpush1.msra.mxu0 %v55
    %157 = vmatprep.subr.mxu0 0.0
    %158 = vmatpush1.msra.mxu0 %v54
    %159 = vmatprep.subr.mxu0 0.0
    %160 = vmatpush1.msra.mxu0 %v53
    %161 = vmatprep.subr.mxu0 0.0
    %162 = vmatpush1.msra.mxu0 %v52
    %163 = vmatprep.subr.mxu0 0.0
    %164 = vmatpush1.msra.mxu0 %v51
    %165 = vmatprep.subr.mxu0 0.0
    %166 = vmatpush1.msra.mxu0 %v50
    %167 = vmatprep.subr.mxu0 0.0
    %168 = vmatpush1.msra.mxu0 %v49
    %169 = vmatprep.subr.mxu0 0.0
    %170 = vmatpush1.msra.mxu0 %v48
    %171 = vmatprep.subr.mxu0 0.0
    %172 = vmatpush1.msra.mxu0 %v47
    %173 = vmatprep.subr.mxu0 0.0
    %174 = vmatpush1.msra.mxu0 %v46
    %175 = vmatprep.subr.mxu0 0.0
    %176 = vmatpush1.msra.mxu0 %v45
    %177 = vmatprep.subr.mxu0 0.0
    %178 = vmatpush1.msra.mxu0 %v44
    %179 = vmatprep.subr.mxu0 0.0
    %180 = vmatpush1.msra.mxu0 %v43
    %181 = vmatprep.subr.mxu0 0.0
    %182 = vmatpush1.msra.mxu0 %v42
    %183 = vmatprep.subr.mxu0 0.0
    %184 = vmatpush1.msra.mxu0 %v41
    %185 = vmatprep.subr.mxu0 0.0
    %186 = vmatpush2.msra.mxu0 %v72
    %187 = vmatprep.subr.mxu0 0.0
    %188 = vmatpush2.msra.mxu0 %v71
    %189 = vmatprep.subr.mxu0 0.0
    %190 = vmatpush2.msra.mxu0 %v70
    %191 = vmatprep.subr.mxu0 0.0
    %192 = vmatpush2.msra.mxu0 %v69
    %193 = vmatprep.subr.mxu0 0.0
    %194 = vmatpush2.msra.mxu0 %v68
    %195 = vmatprep.subr.mxu0 0.0
    %196 = vmatpush2.msra.mxu0 %v67
    %197 = vmatprep.subr.mxu0 0.0
    %198 = vmatpush2.msra.mxu0 %v66
    %199 = vmatprep.subr.mxu0 0.0
    %200 = vmatpush2.msra.mxu0 %v65
    %201 = vmatprep.subr.mxu0 0.0
    %202 = vmatpush2.msra.mxu0 %v64
    %203 = vmatprep.subr.mxu0 0.0
    %204 = vmatpush2.msra.mxu0 %v63
    %205 = vmatprep.subr.mxu0 0.0
    %206 = vmatpush2.msra.mxu0 %v62
    %207 = vmatprep.subr.mxu0 0.0
    %208 = vmatpush2.msra.mxu0 %v61
    %209 = vmatprep.subr.mxu0 0.0
    %210 = vmatpush2.msra.mxu0 %v60
    %211 = vmatprep.subr.mxu0 0.0
    %212 = vmatpush2.msra.mxu0 %v59
    %213 = vmatprep.subr.mxu0 0.0
    %214 = vmatpush2.msra.mxu0 %v58
    %215 = vmatprep.subr.mxu0 0.0
    %216 = vmatpush2.msra.mxu0 %v57
    %217 = vmatprep.mubr.f32.mxu0 %v28
    %218 = vmatmul.mubr.f32.gmra.mxu0 %v27
    %v219 = vpop.f32.mrf.mxu0
    %v220 = vadd.f32 %v144, %v219
    %v221 = vpop.f32.mrf.mxu0
    %222 = vmatprep.mubr.f32.mxu0 %v35
    %223 = vmatmul.mubr.f32.gmra.mxu0 %v34
    %v224 = vpop.f32.mrf.mxu0
    %v225 = vadd.f32 %v144, %v224
    %v226 = vpop.f32.mrf.mxu0
    %227 = vdwg.mxu0
    %228 = vmatprep.subr.mxu0 0.0
    %229 = vmatpush1.msra.mxu0 %v88
    %230 = vmatprep.subr.mxu0 0.0
    %231 = vmatpush1.msra.mxu0 %v87
    %232 = vmatprep.subr.mxu0 0.0
    %233 = vmatpush1.msra.mxu0 %v86
    %234 = vmatprep.subr.mxu0 0.0
    %235 = vmatpush1.msra.mxu0 %v85
    %236 = vmatprep.subr.mxu0 0.0
    %237 = vmatpush1.msra.mxu0 %v84
    %238 = vmatprep.subr.mxu0 0.0
    %239 = vmatpush1.msra.mxu0 %v83
    %240 = vmatprep.subr.mxu0 0.0
    %241 = vmatpush1.msra.mxu0 %v82
    %242 = vmatprep.subr.mxu0 0.0
    %243 = vmatpush1.msra.mxu0 %v81
    %244 = vmatprep.subr.mxu0 0.0
    %245 = vmatpush1.msra.mxu0 %v80
    %246 = vmatprep.subr.mxu0 0.0
    %247 = vmatpush1.msra.mxu0 %v79
    %248 = vmatprep.subr.mxu0 0.0
    %249 = vmatpush1.msra.mxu0 %v78
    %250 = vmatprep.subr.mxu0 0.0
    %251 = vmatpush1.msra.mxu0 %v77
    %252 = vmatprep.subr.mxu0 0.0
    %253 = vmatpush1.msra.mxu0 %v76
    %254 = vmatprep.subr.mxu0 0.0
    %255 = vmatpush1.msra.mxu0 %v75
    %256 = vmatprep.subr.mxu0 0.0
    %257 = vmatpush1.msra.mxu0 %v74
    %258 = vmatprep.subr.mxu0 0.0
    %259 = vmatpush1.msra.mxu0 %v73
    %260 = vmatprep.subr.mxu0 0.0
    %261 = vmatpush2.msra.mxu0 %v104
    %262 = vmatprep.subr.mxu0 0.0
    %263 = vmatpush2.msra.mxu0 %v103
    %264 = vmatprep.subr.mxu0 0.0
    %265 = vmatpush2.msra.mxu0 %v102
    %266 = vmatprep.subr.mxu0 0.0
    %267 = vmatpush2.msra.mxu0 %v101
    %268 = vmatprep.subr.mxu0 0.0
    %269 = vmatpush2.msra.mxu0 %v100
    %270 = vmatprep.subr.mxu0 0.0
    %271 = vmatpush2.msra.mxu0 %v99
    %272 = vmatprep.subr.mxu0 0.0
    %273 = vmatpush2.msra.mxu0 %v98
    %274 = vmatprep.subr.mxu0 0.0
    %275 = vmatpush2.msra.mxu0 %v97
    %276 = vmatprep.subr.mxu0 0.0
    %277 = vmatpush2.msra.mxu0 %v96
    %278 = vmatprep.subr.mxu0 0.0
    %279 = vmatpush2.msra.mxu0 %v95
    %280 = vmatprep.subr.mxu0 0.0
    %281 = vmatpush2.msra.mxu0 %v94
    %282 = vmatprep.subr.mxu0 0.0
    %283 = vmatpush2.msra.mxu0 %v93
    %284 = vmatprep.subr.mxu0 0.0
    %285 = vmatpush2.msra.mxu0 %v92
    %286 = vmatprep.subr.mxu0 0.0
    %287 = vmatpush2.msra.mxu0 %v91
    %288 = vmatprep.subr.mxu0 0.0
    %289 = vmatpush2.msra.mxu0 %v90
    %290 = vmatprep.subr.mxu0 0.0
    %291 = vmatpush2.msra.mxu0 %v89
    %292 = vmatprep.mubr.f32.mxu0 %v30
    %293 = vmatmul.mubr.f32.gmra.mxu0 %v29
    %v294 = vpop.f32.mrf.mxu0
    %v295 = vadd.f32 %v220, %v294
    %v296 = vpop.f32.mrf.mxu0
    %297 = vmatprep.mubr.f32.mxu0 %v37
    %298 = vmatmul.mubr.f32.gmra.mxu0 %v36
    %v299 = vpop.f32.mrf.mxu0
    %v300 = vadd.f32 %v225, %v299
    %v301 = vpop.f32.mrf.mxu0
    %302 = vdwg.mxu0
    %303 = vmatprep.subr.mxu0 0.0
    %304 = vmatpush1.msra.mxu0 %v120
    %305 = vmatprep.subr.mxu0 0.0
    %306 = vmatpush1.msra.mxu0 %v119
    %307 = vmatprep.subr.mxu0 0.0
    %308 = vmatpush1.msra.mxu0 %v118
    %309 = vmatprep.subr.mxu0 0.0
    %310 = vmatpush1.msra.mxu0 %v117
    %311 = vmatprep.subr.mxu0 0.0
    %312 = vmatpush1.msra.mxu0 %v116
    %313 = vmatprep.subr.mxu0 0.0
    %314 = vmatpush1.msra.mxu0 %v115
    %315 = vmatprep.subr.mxu0 0.0
    %316 = vmatpush1.msra.mxu0 %v114
    %317 = vmatprep.subr.mxu0 0.0
    %318 = vmatpush1.msra.mxu0 %v113
    %319 = vmatprep.subr.mxu0 0.0
    %320 = vmatpush1.msra.mxu0 %v112
    %321 = vmatprep.subr.mxu0 0.0
    %322 = vmatpush1.msra.mxu0 %v111
    %323 = vmatprep.subr.mxu0 0.0
    %324 = vmatpush1.msra.mxu0 %v110
    %325 = vmatprep.subr.mxu0 0.0
    %326 = vmatpush1.msra.mxu0 %v109
    %327 = vmatprep.subr.mxu0 0.0
    %328 = vmatpush1.msra.mxu0 %v108
    %329 = vmatprep.subr.mxu0 0.0
    %330 = vmatpush1.msra.mxu0 %v107
    %331 = vmatprep.subr.mxu0 0.0
    %332 = vmatpush1.msra.mxu0 %v106
    %333 = vmatprep.subr.mxu0 0.0
    %334 = vmatpush1.msra.mxu0 %v105
    %335 = vmatprep.subr.mxu0 0.0
    %336 = vmatpush2.msra.mxu0 %v136
    %337 = vmatprep.subr.mxu0 0.0
    %338 = vmatpush2.msra.mxu0 %v135
    %339 = vmatprep.subr.mxu0 0.0
    %340 = vmatpush2.msra.mxu0 %v134
    %341 = vmatprep.subr.mxu0 0.0
    %342 = vmatpush2.msra.mxu0 %v133
    %343 = vmatprep.subr.mxu0 0.0
    %344 = vmatpush2.msra.mxu0 %v132
    %345 = vmatprep.subr.mxu0 0.0
    %346 = vmatpush2.msra.mxu0 %v131
    %347 = vmatprep.subr.mxu0 0.0
    %348 = vmatpush2.msra.mxu0 %v130
    %349 = vmatprep.subr.mxu0 0.0
    %350 = vmatpush2.msra.mxu0 %v129
    %351 = vmatprep.subr.mxu0 0.0
    %352 = vmatpush2.msra.mxu0 %v128
    %353 = vmatprep.subr.mxu0 0.0
    %354 = vmatpush2.msra.mxu0 %v127
    %355 = vmatprep.subr.mxu0 0.0
    %356 = vmatpush2.msra.mxu0 %v126
    %357 = vmatprep.subr.mxu0 0.0
    %358 = vmatpush2.msra.mxu0 %v125
    %359 = vmatprep.subr.mxu0 0.0
    %360 = vmatpush2.msra.mxu0 %v124
    %361 = vmatprep.subr.mxu0 0.0
    %362 = vmatpush2.msra.mxu0 %v123
    %363 = vmatprep.subr.mxu0 0.0
    %364 = vmatpush2.msra.mxu0 %v122
    %365 = vmatprep.subr.mxu0 0.0
    %366 = vmatpush2.msra.mxu0 %v121
    %367 = vmatprep.mubr.f32.mxu0 %v32
    %368 = vmatmul.mubr.f32.gmra.mxu0 %v31
    %v369 = vpop.f32.mrf.mxu0
    %v370 = vadd.f32 %v295, %v369
    %v371 = vpop.f32.mrf.mxu0
    %372 = vmatprep.mubr.f32.mxu0 %v39
    %373 = vmatmul.mubr.f32.gmra.mxu0 %v38
    %v374 = vpop.f32.mrf.mxu0
    %v375 = vadd.f32 %v300, %v374
    %v376 = vpop.f32.mrf.mxu0
    %377 = vdwg.mxu0
    %378 = vmatprep.subr.mxu0 0.0
    %379 = vmatpush1.msra.mxu0 0.0
    %380 = vmatprep.subr.mxu0 0.0
    %381 = vmatpush1.msra.mxu0 0.0
    %382 = vmatprep.subr.mxu0 0.0
    %383 = vmatpush1.msra.mxu0 0.0
    %384 = vmatprep.subr.mxu0 0.0
    %385 = vmatpush1.msra.mxu0 0.0
    %386 = vmatprep.subr.mxu0 0.0
    %387 = vmatpush1.msra.mxu0 0.0
    %388 = vmatprep.subr.mxu0 0.0
    %389 = vmatpush1.msra.mxu0 0.0
    %390 = vmatprep.subr.mxu0 0.0
    %391 = vmatpush1.msra.mxu0 0.0
    %392 = vmatprep.subr.mxu0 0.0
    %393 = vmatpush1.msra.mxu0 0.0
    %394 = vmatprep.subr.mxu0 0.0
    %395 = vmatpush1.msra.mxu0 0.0
    %396 = vmatprep.subr.mxu0 0.0
    %397 = vmatpush1.msra.mxu0 0.0
    %398 = vmatprep.subr.mxu0 0.0
    %399 = vmatpush1.msra.mxu0 0.0
    %400 = vmatprep.subr.mxu0 0.0
    %401 = vmatpush1.msra.mxu0 0.0
    %402 = vmatprep.subr.mxu0 0.0
    %403 = vmatpush1.msra.mxu0 0.0
    %404 = vmatprep.subr.mxu0 0.0
    %405 = vmatpush1.msra.mxu0 0.0
    %406 = vmatprep.subr.mxu0 0.0
    %407 = vmatpush1.msra.mxu0 %v138
    %408 = vmatprep.subr.mxu0 0.0
    %409 = vmatpush1.msra.mxu0 %v137
    %410 = vmatprep.subr.mxu0 0.0
    %411 = vmatpush2.msra.mxu0 0.0
    %412 = vmatprep.subr.mxu0 0.0
    %413 = vmatpush2.msra.mxu0 0.0
    %414 = vmatprep.subr.mxu0 0.0
    %415 = vmatpush2.msra.mxu0 0.0
    %416 = vmatprep.subr.mxu0 0.0
    %417 = vmatpush2.msra.mxu0 0.0
    %418 = vmatprep.subr.mxu0 0.0
    %419 = vmatpush2.msra.mxu0 0.0
    %420 = vmatprep.subr.mxu0 0.0
    %421 = vmatpush2.msra.mxu0 0.0
    %422 = vmatprep.subr.mxu0 0.0
    %423 = vmatpush2.msra.mxu0 0.0
    %424 = vmatprep.subr.mxu0 0.0
    %425 = vmatpush2.msra.mxu0 0.0
    %426 = vmatprep.subr.mxu0 0.0
    %427 = vmatpush2.msra.mxu0 0.0
    %428 = vmatprep.subr.mxu0 0.0
    %429 = vmatpush2.msra.mxu0 0.0
    %430 = vmatprep.subr.mxu0 0.0
    %431 = vmatpush2.msra.mxu0 0.0
    %432 = vmatprep.subr.mxu0 0.0
    %433 = vmatpush2.msra.mxu0 0.0
    %434 = vmatprep.subr.mxu0 0.0
    %435 = vmatpush2.msra.mxu0 0.0
    %436 = vmatprep.subr.mxu0 0.0
    %437 = vmatpush2.msra.mxu0 0.0
    %438 = vmatprep.subr.mxu0 0.0
    %439 = vmatpush2.msra.mxu0 0.0
    %440 = vmatprep.subr.mxu0 0.0
    %441 = vmatpush2.msra.mxu0 0.0
    %442 = vmatprep.mubr.f32.mxu0 0.0
    %443 = vmatmul.mubr.f32.gmra.mxu0 %v148
    %v444 = vpop.f32.mrf.mxu0
    %v445 = vadd.f32 %v370, %v444
    %v446 = vpop.f32.mrf.mxu0
    %447 = vmatprep.mubr.f32.mxu0 0.0
    %448 = vmatmul.mubr.f32.gmra.mxu0 %v151
    %v449 = vpop.f32.mrf.mxu0
    %v450 = vadd.f32 %v375, %v449
    %v451 = vpop.f32.mrf.mxu0
    %452 = vdwg.mxu0
    %v453 = vmax.f32 %v445, 0.0
    %v454 = vmax.f32 %v450, 0.0
    %v455 = vld [vmem:[%s3] sm:$0xff]
    %v456 = vld [vmem:[%s3 + $0x8] sm:$0xff]
    %v457 = vld [vmem:[%s3 + $0x10] sm:$0xff]
    %v458 = vld [vmem:[%s3 + $0x18] sm:$0xff]
    %v459 = vld [vmem:[%s3 + $0x20] sm:$0xff]
    %v460 = vld [vmem:[%s3 + $0x28] sm:$0xff]
    %v461 = vld [vmem:[%s3 + $0x30] sm:$0xff]
    %v462 = vld [vmem:[%s3 + $0x38] sm:$0xff]
    %v463 = vld [vmem:[%s3 + $0x40] sm:$0xff]
    %v464 = vld [vmem:[%s3 + $0x48] sm:$0xff]
    %v465 = vld [vmem:[%s3 + $0x50] sm:$0xff]
    %v466 = vld [vmem:[%s3 + $0x58] sm:$0xff]
    %v467 = vld [vmem:[%s3 + $0x60] sm:$0xff]
    %v468 = vld [vmem:[%s3 + $0x68] sm:$0xff]
    %v469 = vld [vmem:[%s3 + $0x70] sm:$0xff]
    %v470 = vld [vmem:[%s3 + $0x78] sm:$0xff]
    %v471 = vld [vmem:[%s4] sm:$0x1]
    %v473 = vlaneseq
    %v474 = vshrl.u32 %v473, 7
    %v475 = vsub.s32 0, %v474
    %v476 = vrot.slane %v471, %v475
    %478 = vmatprep.subr.mxu0 0.0
    %479 = vmatpush1.msra.mxu0 %v470
    %480 = vmatprep.subr.mxu0 0.0
    %481 = vmatpush1.msra.mxu0 %v469
    %482 = vmatprep.subr.mxu0 0.0
    %483 = vmatpush1.msra.mxu0 %v468
    %484 = vmatprep.subr.mxu0 0.0
    %485 = vmatpush1.msra.mxu0 %v467
    %486 = vmatprep.subr.mxu0 0.0
    %487 = vmatpush1.msra.mxu0 %v466
    %488 = vmatprep.subr.mxu0 0.0
    %489 = vmatpush1.msra.mxu0 %v465
    %490 = vmatprep.subr.mxu0 0.0
    %491 = vmatpush1.msra.mxu0 %v464
    %492 = vmatprep.subr.mxu0 0.0
    %493 = vmatpush1.msra.mxu0 %v463
    %494 = vmatprep.subr.mxu0 0.0
    %495 = vmatpush1.msra.mxu0 %v462
    %496 = vmatprep.subr.mxu0 0.0
    %497 = vmatpush1.msra.mxu0 %v461
    %498 = vmatprep.subr.mxu0 0.0
    %499 = vmatpush1.msra.mxu0 %v460
    %500 = vmatprep.subr.mxu0 0.0
    %501 = vmatpush1.msra.mxu0 %v459
    %502 = vmatprep.subr.mxu0 0.0
    %503 = vmatpush1.msra.mxu0 %v458
    %504 = vmatprep.subr.mxu0 0.0
    %505 = vmatpush1.msra.mxu0 %v457
    %506 = vmatprep.subr.mxu0 0.0
    %507 = vmatpush1.msra.mxu0 %v456
    %508 = vmatprep.subr.mxu0 0.0
    %509 = vmatpush1.msra.mxu0 %v455
    %510 = vmatprep.subr.mxu0 0.0
    %511 = vmatpush2.msra.mxu0 0.0
    %512 = vmatprep.subr.mxu0 0.0
    %513 = vmatpush2.msra.mxu0 0.0
    %514 = vmatprep.subr.mxu0 0.0
    %515 = vmatpush2.msra.mxu0 0.0
    %516 = vmatprep.subr.mxu0 0.0
    %517 = vmatpush2.msra.mxu0 0.0
    %518 = vmatprep.subr.mxu0 0.0
    %519 = vmatpush2.msra.mxu0 0.0
    %520 = vmatprep.subr.mxu0 0.0
    %521 = vmatpush2.msra.mxu0 0.0
    %522 = vmatprep.subr.mxu0 0.0
    %523 = vmatpush2.msra.mxu0 0.0
    %524 = vmatprep.subr.mxu0 0.0
    %525 = vmatpush2.msra.mxu0 0.0
    %526 = vmatprep.subr.mxu0 0.0
    %527 = vmatpush2.msra.mxu0 0.0
    %528 = vmatprep.subr.mxu0 0.0
    %529 = vmatpush2.msra.mxu0 0.0
    %530 = vmatprep.subr.mxu0 0.0
    %531 = vmatpush2.msra.mxu0 0.0
    %532 = vmatprep.subr.mxu0 0.0
    %533 = vmatpush2.msra.mxu0 0.0
    %534 = vmatprep.subr.mxu0 0.0
    %535 = vmatpush2.msra.mxu0 0.0
    %536 = vmatprep.subr.mxu0 0.0
    %537 = vmatpush2.msra.mxu0 0.0
    %538 = vmatprep.subr.mxu0 0.0
    %539 = vmatpush2.msra.mxu0 0.0
    %540 = vmatprep.subr.mxu0 0.0
    %541 = vmatpush2.msra.mxu0 0.0
    %542 = vmatprep.mubr.f32.mxu0 0.0
    %543 = vmatmul.mubr.f32.gmra.mxu0 %v453
    %v544 = vpop.f32.mrf.mxu0
    %v545 = vadd.f32 %v476, %v544
    %v546 = vpop.f32.mrf.mxu0
    %547 = vmatprep.mubr.f32.mxu0 0.0
    %548 = vmatmul.mubr.f32.gmra.mxu0 %v454
    %v549 = vpop.f32.mrf.mxu0
    %v550 = vadd.f32 %v476, %v549
    %v551 = vpop.f32.mrf.mxu0
    %552 = vdwg.mxu0
    %v553 = vmax.f32 %v545, 0.0
    %v554 = vmax.f32 %v550, 0.0
    %v555 = vld [vmem:[%s5] sm:$0xff]
    %v556 = vld [vmem:[%s5 + $0x8] sm:$0xff]
    %v557 = vld [vmem:[%s5 + $0x10] sm:$0xff]
    %v558 = vld [vmem:[%s5 + $0x18] sm:$0xff]
    %v559 = vld [vmem:[%s5 + $0x20] sm:$0xff]
    %v560 = vld [vmem:[%s5 + $0x28] sm:$0xff]
    %v561 = vld [vmem:[%s5 + $0x30] sm:$0xff]
    %v562 = vld [vmem:[%s5 + $0x38] sm:$0xff]
    %v563 = vld [vmem:[%s5 + $0x40] sm:$0xff]
    %v564 = vld [vmem:[%s5 + $0x48] sm:$0xff]
    %v565 = vld [vmem:[%s5 + $0x50] sm:$0xff]
    %v566 = vld [vmem:[%s5 + $0x58] sm:$0xff]
    %v567 = vld [vmem:[%s5 + $0x60] sm:$0xff]
    %v568 = vld [vmem:[%s5 + $0x68] sm:$0xff]
    %v569 = vld [vmem:[%s5 + $0x70] sm:$0xff]
    %v570 = vld [vmem:[%s5 + $0x78] sm:$0xff]
    %v571 = vld [vmem:[%s6] sm:$0x1]
    %v573 = vlaneseq
    %v574 = vshrl.u32 %v573, 7
    %v575 = vsub.s32 0, %v574
    %v576 = vrot.slane %v571, %v575
    %578 = vmatprep.subr.mxu0 0.0
    %579 = vmatpush1.msra.mxu0 %v570
    %580 = vmatprep.subr.mxu0 0.0
    %581 = vmatpush1.msra.mxu0 %v569
    %582 = vmatprep.subr.mxu0 0.0
    %583 = vmatpush1.msra.mxu0 %v568
    %584 = vmatprep.subr.mxu0 0.0
    %585 = vmatpush1.msra.mxu0 %v567
    %586 = vmatprep.subr.mxu0 0.0
    %587 = vmatpush1.msra.mxu0 %v566
    %588 = vmatprep.subr.mxu0 0.0
    %589 = vmatpush1.msra.mxu0 %v565
    %590 = vmatprep.subr.mxu0 0.0
    %591 = vmatpush1.msra.mxu0 %v564
    %592 = vmatprep.subr.mxu0 0.0
    %593 = vmatpush1.msra.mxu0 %v563
    %594 = vmatprep.subr.mxu0 0.0
    %595 = vmatpush1.msra.mxu0 %v562
    %596 = vmatprep.subr.mxu0 0.0
    %597 = vmatpush1.msra.mxu0 %v561
    %598 = vmatprep.subr.mxu0 0.0
    %599 = vmatpush1.msra.mxu0 %v560
    %600 = vmatprep.subr.mxu0 0.0
    %601 = vmatpush1.msra.mxu0 %v559
    %602 = vmatprep.subr.mxu0 0.0
    %603 = vmatpush1.msra.mxu0 %v558
    %604 = vmatprep.subr.mxu0 0.0
    %605 = vmatpush1.msra.mxu0 %v557
    %606 = vmatprep.subr.mxu0 0.0
    %607 = vmatpush1.msra.mxu0 %v556
    %608 = vmatprep.subr.mxu0 0.0
    %609 = vmatpush1.msra.mxu0 %v555
    %610 = vmatprep.subr.mxu0 0.0
    %611 = vmatpush2.msra.mxu0 0.0
    %612 = vmatprep.subr.mxu0 0.0
    %613 = vmatpush2.msra.mxu0 0.0
    %614 = vmatprep.subr.mxu0 0.0
    %615 = vmatpush2.msra.mxu0 0.0
    %616 = vmatprep.subr.mxu0 0.0
    %617 = vmatpush2.msra.mxu0 0.0
    %618 = vmatprep.subr.mxu0 0.0
    %619 = vmatpush2.msra.mxu0 0.0
    %620 = vmatprep.subr.mxu0 0.0
    %621 = vmatpush2.msra.mxu0 0.0
    %622 = vmatprep.subr.mxu0 0.0
    %623 = vmatpush2.msra.mxu0 0.0
    %624 = vmatprep.subr.mxu0 0.0
    %625 = vmatpush2.msra.mxu0 0.0
    %626 = vmatprep.subr.mxu0 0.0
    %627 = vmatpush2.msra.mxu0 0.0
    %628 = vmatprep.subr.mxu0 0.0
    %629 = vmatpush2.msra.mxu0 0.0
    %630 = vmatprep.subr.mxu0 0.0
    %631 = vmatpush2.msra.mxu0 0.0
    %632 = vmatprep.subr.mxu0 0.0
    %633 = vmatpush2.msra.mxu0 0.0
    %634 = vmatprep.subr.mxu0 0.0
    %635 = vmatpush2.msra.mxu0 0.0
    %636 = vmatprep.subr.mxu0 0.0
    %637 = vmatpush2.msra.mxu0 0.0
    %638 = vmatprep.subr.mxu0 0.0
    %639 = vmatpush2.msra.mxu0 0.0
    %640 = vmatprep.subr.mxu0 0.0
    %641 = vmatpush2.msra.mxu0 0.0
    %642 = vmatprep.mubr.f32.mxu0 0.0
    %643 = vmatmul.mubr.f32.gmra.mxu0 %v553
    %v644 = vpop.f32.mrf.mxu0
    %v645 = vadd.f32 %v576, %v644
    %v646 = vpop.f32.mrf.mxu0
    %647 = vmatprep.mubr.f32.mxu0 0.0
    %648 = vmatmul.mubr.f32.gmra.mxu0 %v554
    %v649 = vpop.f32.mrf.mxu0
    %v650 = vadd.f32 %v576, %v649
    %v651 = vpop.f32.mrf.mxu0
    %652 = vdwg.mxu0
    %v653 = vmax.f32 %v645, 0.0
    %v654 = vmax.f32 %v650, 0.0
    %655 = vst [vmem:[#allocation2] sm:$0xff] %v653
    %656 = vst [vmem:[#allocation2 + $0x8] sm:$0xff] %v654
    // Predicated region
    $region30: #{dist_mnist_forward.1} parent=1 // pred_check
      _
    $region31: #{dist_mnist_forward.1} parent=1 // pred_check_branch
      %658 = sbr.rel (0) target = $region33
    $region32: #{dist_mnist_forward.1} parent=1 // pred_region
      %s660 = ssub.s32 256, 256
      %661 = vsyncadd [#allocation3], %s660
      %s662 = sshll.u32 [#allocation2], 4
      %s663 = int_to_ptr.vmem [resolvable:$true] %s662
      %668 = dma.vmem_to_hbm [thread:$0]  %s663, 256, %s7, [#allocation3], 128, 128, 8
    $region33: #{dist_mnist_forward.1} parent=1 // pred_fallthru
      _
    // Predicated region
    $region34: #{dist_mnist_forward.1} parent=1 // pred_check
      _
    $region35: #{dist_mnist_forward.1} parent=1 // pred_check_branch
      %670 = sbr.rel (0) target = $region37
    $region36: #{dist_mnist_forward.1} parent=1 // pred_region
      %671 = dma.done [#allocation3], 256
    $region37: #{dist_mnist_forward.1} parent=1 // pred_fallthru
      _
    %672 = vsyncpa [#allocation3], 1

</llo_original>
